<compile_context>
chip_gen: v7x
topology: tpu7x:2x2x1
jax: 0.10.0
libtpu: 0.0.40
codegen_flags: <defaults>
</compile_context>

<pallas_src>
import jax
import jax.numpy as jnp
from jax.experimental import pallas as pl
from jax.experimental.pallas import tpu as pltpu

_MiB = 1024 * 1024


def _se_kernel(x_ref, w1s_ref, w2_ref, o_ref):
    # x_ref / o_ref: (b_blk, C, HW)
    # w1s_ref: (Cr, C)  -- already pre-scaled by 1/HW on the host
    # w2_ref:  (C, Cr)

    # Squeeze: spatial sum with f32 accumulation (no slab-wide f32 copy of x).
    sums = jnp.sum(x_ref[...], axis=-1, dtype=jnp.float32)          # (b_blk, C)

    # Excitation (batched over the block).  dot_general contracts dim 1 of
    # both operands, avoiding an in-kernel transpose of the weights.
    h = jax.lax.dot_general(
        sums, w1s_ref[...],
        dimension_numbers=(((1,), (1,)), ((), ())),
        preferred_element_type=jnp.float32)                          # (b_blk, Cr)
    h = jnp.maximum(h, 0.0)
    s = jax.lax.dot_general(
        h, w2_ref[...],
        dimension_numbers=(((1,), (1,)), ((), ())),
        preferred_element_type=jnp.float32)                          # (b_blk, C)
    s = jax.nn.sigmoid(s)
    gate = s[:, :, None]                                             # (b_blk, C, 1) f32

    # Scale: re-read x from VMEM (keeps the slab out of long vreg live ranges).
    if o_ref.dtype == jnp.float32:
        o_ref[...] = x_ref[...] * gate
    else:
        # Match reference numerics for narrow dtypes: multiply in f32, then cast.
        o_ref[...] = (x_ref[...].astype(jnp.float32) * gate).astype(o_ref.dtype)


def _vmem_headroom_bytes():
    """Physical VMEM minus ~16 MiB headroom for Mosaic internal scratch."""
    try:
        cap = int(pltpu.get_tpu_info().vmem_capacity_bytes)
    except Exception:
        cap = 64 * _MiB  # conservative fallback (v7x-sized)
    return max(16 * _MiB, cap - 16 * _MiB)


@jax.jit
def se_layer(x, w1, w2):
    """x: (B, C, H, W) NCHW.  w1: (C//r, C).  w2: (C, C//r)."""
    B, C, H, W = x.shape
    HW = H * W
    Cr = w1.shape[0]

    x_flat = x.reshape(B, C, HW)

    # Fold the 1/HW average-pool normalization into the first FC weight so the
    # kernel only needs the raw spatial sum (linear => mathematically exact).
    w1_scaled = (w1.astype(jnp.float32) * (1.0 / float(HW)))

    # ---------------- block / grid shaping ----------------
    vmem_headroom = _vmem_headroom_bytes()
    bytes_per_sample = C * HW * x.dtype.itemsize
    weight_bytes = (w1_scaled.size * 4) + (w2.size * w2.dtype.itemsize)
    slack = 4 * _MiB

    # Largest block that keeps double-buffered in+out (+weights, +slack) in budget.
    max_block_bytes = max(bytes_per_sample,
                          (vmem_headroom - 2 * weight_bytes - slack) // 4)
    max_samples = max(1, max_block_bytes // bytes_per_sample)

    # Prefer >= 4 grid steps (pipeline overlap) and >= 2 steps (v7x dual TC),
    # but keep blocks >= ~1 MiB when B is large enough.  VMEM cap always wins.
    target_steps = 4
    min_samples = max(1, (1 * _MiB) // bytes_per_sample)
    b_blk = max(pl.cdiv(B, target_steps), min(min_samples, pl.cdiv(B, 2)))
    b_blk = max(1, min(b_blk, max_samples, B))
    grid_b = pl.cdiv(B, b_blk)          # ragged last block is fine (rows independent)
    block_bytes = b_blk * bytes_per_sample

    # Buffering: double-buffer the big slabs when they fit, else single-buffer.
    buffering = 2
    need = 2 * buffering * block_bytes + 2 * weight_bytes + slack
    if need > vmem_headroom:
        buffering = 1
        need = 2 * buffering * block_bytes + 2 * weight_bytes + slack
    vmem_limit = int(min(vmem_headroom, max(16 * _MiB, need)))

    slab_kwargs = {} if buffering == 2 else {"pipeline_mode": pl.Buffered(1)}
    x_spec = pl.BlockSpec((b_blk, C, HW), lambda b: (b, 0, 0), **slab_kwargs)
    out_spec = pl.BlockSpec((b_blk, C, HW), lambda b: (b, 0, 0), **slab_kwargs)

    # Advisory cost: firmly HBM-bound (2 passes over x), tiny matmuls.
    cost = pl.CostEstimate(
        flops=2 * B * C * HW + 4 * B * C * Cr,
        transcendentals=B * C,
        bytes_accessed=2 * B * C * HW * x.dtype.itemsize + weight_bytes,
    )

    out_flat = pl.pallas_call(
        _se_kernel,
        out_shape=jax.ShapeDtypeStruct((B, C, HW), x.dtype),
        grid_spec=pltpu.PrefetchScalarGridSpec(
            num_scalar_prefetch=0,
            grid=(grid_b,),
            in_specs=[
                x_spec,
                pl.BlockSpec((Cr, C), lambda b: (0, 0)),
                pl.BlockSpec((C, Cr), lambda b: (0, 0)),
            ],
            out_specs=out_spec,
        ),
        compiler_params=pltpu.CompilerParams(
            dimension_semantics=("parallel",),
            vmem_limit_bytes=vmem_limit,
        ),
        cost_estimate=cost,
    )(x_flat, w1_scaled, w2)

    return out_flat.reshape(B, C, H, W)


def se_layer_ref(x, w1, w2):
    """Pure-JAX reference mirroring the PyTorch forward."""
    y = jnp.mean(x.astype(jnp.float32), axis=(2, 3))              # (B, C)
    y = jnp.maximum(y @ w1.T, 0.0)                                # (B, C//r)
    y = jax.nn.sigmoid(y @ w2.T)                                  # (B, C)
    return (x.astype(jnp.float32) * y[:, :, None, None]).astype(x.dtype)


if __name__ == "__main__":
    # Module config: channel=64, reduction=16  ->  hidden Cr = 4
    B, C, H, W = 2, 64, 16, 16
    reduction = 16
    Cr = C // reduction

    key = jax.random.PRNGKey(0)
    kx, k1, k2 = jax.random.split(key, 3)

    x = jax.random.normal(kx, (B, C, H, W), dtype=jnp.float32)
    # Deterministic synthetic weights for the two bias-free Linear layers.
    w1 = jax.random.normal(k1, (Cr, C), dtype=jnp.float32) * (1.0 / jnp.sqrt(C))
    w2 = jax.random.normal(k2, (C, Cr), dtype=jnp.float32) * (1.0 / jnp.sqrt(Cr))

    out = se_layer(x, w1, w2)
    out = jax.block_until_ready(out)

    ref = se_layer_ref(x, w1, w2)
    assert out.shape == (B, C, H, W)
    assert jnp.allclose(out, ref, atol=1e-5, rtol=1e-5), "mismatch vs reference"

    print("KERNEL_OK")
</pallas_src>

<mosaic_0001>
module attributes {stable_mosaic.version = 11 : i64} {
  func.func @_se_kernel(%arg0: i32, %arg1: memref<1x64x256xf32, #tpu.memory_space<vmem>>, %arg2: memref<4x64xf32, #tpu.memory_space<vmem>>, %arg3: memref<64x4xf32, #tpu.memory_space<vmem>>, %arg4: memref<1x64x256xf32, #tpu.memory_space<vmem>>) attributes {dimension_semantics = [#tpu.dimension_semantics<parallel>], iteration_bounds = array<i64: 2>, scalar_prefetch = 0 : i64, scratch_operands = 0 : i64, tpu.core_type = #tpu.core_type<tc>, window_params = [{transform_indices = @transform_0, window_bounds = array<i64: 1, 64, 256>}, {pipeline_mode = #tpu.pipeline_mode<synchronous>, transform_indices = @transform_1, window_bounds = array<i64: 4, 64>}, {pipeline_mode = #tpu.pipeline_mode<synchronous>, transform_indices = @transform_2, window_bounds = array<i64: 64, 4>}, {transform_indices = @transform_3, window_bounds = array<i64: 1, 64, 256>}]} {
    %c0 = arith.constant 0 : index
    %c0_0 = arith.constant 0 : index
    %c0_1 = arith.constant 0 : index
    %0 = vector.load %arg1[%c0, %c0_0, %c0_1] : memref<1x64x256xf32, #tpu.memory_space<vmem>>, vector<1x64x256xf32>
    %cst = arith.constant dense<0.000000e+00> : vector<1x64xf32>
    %1 = vector.multi_reduction <add>, %0, %cst [2] : vector<1x64x256xf32> to vector<1x64xf32>
    %c0_2 = arith.constant 0 : index
    %c0_3 = arith.constant 0 : index
    %2 = vector.load %arg2[%c0_2, %c0_3] : memref<4x64xf32, #tpu.memory_space<vmem>>, vector<4x64xf32>
    %cst_4 = arith.constant dense<0.000000e+00> : vector<1x4xf32>
    %3 = tpu.matmul %1, %2, %cst_4 {dimension_numbers = #tpu.dot_dimension_numbers<[1], [1], [0], [0], [0, 0, 1, 0], [], []>} : vector<1x64xf32>, vector<4x64xf32>, vector<1x4xf32> -> vector<1x4xf32>
    %cst_5 = arith.constant 0.000000e+00 : f32
    %4 = vector.broadcast %cst_5 : f32 to vector<1x4xf32>
    %5 = arith.maximumf %3, %4 : vector<1x4xf32>
    %c0_6 = arith.constant 0 : index
    %c0_7 = arith.constant 0 : index
    %6 = vector.load %arg3[%c0_6, %c0_7] : memref<64x4xf32, #tpu.memory_space<vmem>>, vector<64x4xf32>
    %cst_8 = arith.constant dense<0.000000e+00> : vector<1x64xf32>
    %7 = tpu.matmul %5, %6, %cst_8 {dimension_numbers = #tpu.dot_dimension_numbers<[1], [1], [0], [0], [0, 0, 1, 0], [], []>} : vector<1x4xf32>, vector<64x4xf32>, vector<1x64xf32> -> vector<1x64xf32>
    %8 = arith.negf %7 : vector<1x64xf32>
    %9 = math.exp %8 : vector<1x64xf32>
    %cst_9 = arith.constant 1.000000e+00 : f32
    %10 = vector.broadcast %cst_9 : f32 to vector<1x64xf32>
    %11 = arith.addf %10, %9 : vector<1x64xf32>
    %12 = arith.divf %10, %11 : vector<1x64xf32>
    %13 = vector.shape_cast %12 : vector<1x64xf32> to vector<1x64x1xf32>
    %c0_10 = arith.constant 0 : index
    %c0_11 = arith.constant 0 : index
    %c0_12 = arith.constant 0 : index
    %14 = vector.load %arg1[%c0_10, %c0_11, %c0_12] : memref<1x64x256xf32, #tpu.memory_space<vmem>>, vector<1x64x256xf32>
    %15 = vector.broadcast %13 : vector<1x64x1xf32> to vector<1x64x256xf32>
    %16 = arith.mulf %14, %15 : vector<1x64x256xf32>
    %c0_13 = arith.constant 0 : index
    %c0_14 = arith.constant 0 : index
    %c0_15 = arith.constant 0 : index
    %17 = vector.load %arg4[%c0_13, %c0_14, %c0_15] : memref<1x64x256xf32, #tpu.memory_space<vmem>>, vector<1x64x256xf32>
    tpu.vector_store %arg4[%c0_13, %c0_14, %c0_15], %16 {strides = array<i32>} : memref<1x64x256xf32, #tpu.memory_space<vmem>>, vector<1x64x256xf32>,
    return
  }
  func.func @transform_0(%arg0: i32) -> (i32, i32, i32) {
    %c0_i32 = arith.constant 0 : i32
    %c0_i32_0 = arith.constant 0 : i32
    %c0_i32_1 = arith.constant 0 : i32
    return %arg0, %c0_i32, %c0_i32_0 : i32, i32, i32
  }
  func.func @transform_1(%arg0: i32) -> (i32, i32) {
    %c0_i32 = arith.constant 0 : i32
    %c0_i32_0 = arith.constant 0 : i32
    %c0_i32_1 = arith.constant 0 : i32
    return %c0_i32, %c0_i32_0 : i32, i32
  }
  func.func @transform_2(%arg0: i32) -> (i32, i32) {
    %c0_i32 = arith.constant 0 : i32
    %c0_i32_0 = arith.constant 0 : i32
    %c0_i32_1 = arith.constant 0 : i32
    return %c0_i32, %c0_i32_0 : i32, i32
  }
  func.func @transform_3(%arg0: i32) -> (i32, i32, i32) {
    %c0_i32 = arith.constant 0 : i32
    %c0_i32_0 = arith.constant 0 : i32
    %c0_i32_1 = arith.constant 0 : i32
    return %arg0, %c0_i32, %c0_i32_0 : i32, i32, i32
  }
}

</mosaic_0001>

<llo_original>
// kernel: se_layer.1
$region0: #{se_layer.1}
  #allocation0 [shape = 'u32[]', space=smem, size = 0x4, offset = 0x4, fixed_abs, tag = 'smem constant byte address 0x4 - core index']
  #allocation1 [shape = 'u32[144,128]{1,0:T(1,128)}', space=vmem, size = 0x12000, scoped, tag = 'internal scratch']
  %s0 = inlined_call_operand.vmem [shape: f32[2,64,256], index: 0, kind: input, shape index: {}]
  %s1 = inlined_call_operand.vmem [shape: f32[4,64], index: 1, kind: input, shape index: {}]
  %s2 = inlined_call_operand.vmem [shape: f32[64,4], index: 2, kind: input, shape index: {}]
  %s3 = inlined_call_operand.vmem [shape: f32[2,64,256], index: 3, kind: output, shape index: {}]
  %s4 = sld [smem:[#allocation0]]
  $region45: #{se_layer.1} parent=0
    _
  %s6 = ssub.s32 1, %s4
  %s7 = scalar_select 0, %s6, %s4
  loop: start=0, step=1, limit=4
  $region2: #{se_layer.1} parent=0 // loop_pre_header
    _
  $region3: #{se_layer.1} parent=0 // loop_header
    %s9 = sphi 0, %s13
    %p10 = scmp.ge.s32.totalorder %s9, 4
    %s19 = sphi 0, %s21
    %s22 = sphi 0, %s19
    %s23 = sphi 0, %s22
    %s39 = sphi 0, %s23
    %s43 = sphi 0, %s43
    %s45 = sphi 0, %s43
    %s46 = sphi 0, %s45
    %s60 = sphi 0, %s46
    %s64 = sphi 0, %s64
    %s66 = sphi 0, %s64
    %s67 = sphi 0, %s66
    %s81 = sphi 0, %s67
    %s87 = sphi 0, %s89
    %s90 = sphi 0, %s87
    %s91 = sphi 0, %s90
    %s107 = sphi 0, %s91
  $region4: #{se_layer.1} parent=0 // loop_header_branch
    %12 = sbr.rel (%p10) target = $region8
  $region5: #{se_layer.1} parent=0 // loop_body
    %s14 = ssub.s32 %s9, 1
    %s15 = ssub.s32 %s9, 2
    %s16 = sadd.s32 %s9, 1
    %s17 = ssub.s32 %s9, %s16
    %p18 = scmp.eq.s32.totalorder %s17, 0
    %s20 = sadd.s32 %s19, 1
    %s21 = scalar_select %p18, %s19, %s20
    %p24 = pneg %p18
    %p25 = scmp.eq.s32.totalorder %s9, 1
    %p26 = por %p24, %p25
    %p27 = scmp.ne.s32.totalorder %s19, %s22
    %p28 = scmp.eq.s32.totalorder %s9, 0
    %p29 = por %p27, %p28
    %p30 = scmp.ne.s32.totalorder %s19, %s22
    %p31 = scmp.eq.s32.totalorder %s14, 1
    %p32 = por %p30, %p31
    %p33 = scmp.ne.s32.totalorder %s22, %s23
    %p34 = scmp.eq.s32.totalorder %s14, 0
    %p35 = por %p33, %p34
    %p36 = scmp.ne.s32.totalorder %s22, %s23
    %p37 = scmp.eq.s32.totalorder %s15, 1
    %p38 = por %p36, %p37
    %p40 = scmp.ne.s32.totalorder %s23, %s39
    %p41 = scmp.eq.s32.totalorder %s15, 0
    %p42 = por %p40, %p41
    %s44 = sadd.s32 %s43, 1
    %p47 = scmp.eq.s32.totalorder %s9, 1
    %p48 = scmp.ne.s32.totalorder %s43, %s45
    %p49 = scmp.eq.s32.totalorder %s9, 0
    %p50 = por %p48, %p49
    %p51 = scmp.ne.s32.totalorder %s43, %s45
    %p52 = scmp.eq.s32.totalorder %s14, 1
    %p53 = por %p51, %p52
    %p54 = scmp.ne.s32.totalorder %s45, %s46
    %p55 = scmp.eq.s32.totalorder %s14, 0
    %p56 = por %p54, %p55
    %p57 = scmp.ne.s32.totalorder %s45, %s46
    %p58 = scmp.eq.s32.totalorder %s15, 1
    %p59 = por %p57, %p58
    %p61 = scmp.ne.s32.totalorder %s46, %s60
    %p62 = scmp.eq.s32.totalorder %s15, 0
    %p63 = por %p61, %p62
    %s65 = sadd.s32 %s64, 1
    %p68 = scmp.eq.s32.totalorder %s9, 1
    %p69 = scmp.ne.s32.totalorder %s64, %s66
    %p70 = scmp.eq.s32.totalorder %s9, 0
    %p71 = por %p69, %p70
    %p72 = scmp.ne.s32.totalorder %s64, %s66
    %p73 = scmp.eq.s32.totalorder %s14, 1
    %p74 = por %p72, %p73
    %p75 = scmp.ne.s32.totalorder %s66, %s67
    %p76 = scmp.eq.s32.totalorder %s14, 0
    %p77 = por %p75, %p76
    %p78 = scmp.ne.s32.totalorder %s66, %s67
    %p79 = scmp.eq.s32.totalorder %s15, 1
    %p80 = por %p78, %p79
    %p82 = scmp.ne.s32.totalorder %s67, %s81
    %p83 = scmp.eq.s32.totalorder %s15, 0
    %p84 = por %p82, %p83
    %s85 = ssub.s32 %s9, %s16
    %p86 = scmp.eq.s32.totalorder %s85, 0
    %s88 = sadd.s32 %s87, 1
    %s89 = scalar_select %p86, %s87, %s88
    %p92 = pneg %p86
    %p93 = scmp.eq.s32.totalorder %s9, 1
    %p94 = por %p92, %p93
    %p95 = scmp.ne.s32.totalorder %s87, %s90
    %p96 = scmp.eq.s32.totalorder %s9, 0
    %p97 = por %p95, %p96
    %p98 = scmp.ne.s32.totalorder %s87, %s90
    %p99 = scmp.eq.s32.totalorder %s14, 1
    %p100 = por %p98, %p99
    %p101 = scmp.ne.s32.totalorder %s90, %s91
    %p102 = scmp.eq.s32.totalorder %s14, 0
    %p103 = por %p101, %p102
    %p104 = scmp.ne.s32.totalorder %s90, %s91
    %p105 = scmp.eq.s32.totalorder %s15, 1
    %p106 = por %p104, %p105
    %p108 = scmp.ne.s32.totalorder %s91, %s107
    %p109 = scmp.eq.s32.totalorder %s15, 0
    %p110 = por %p108, %p109
    %p111 = scmp.le.s32.totalorder 1, %s9
    %p112 = scmp.lt.s32.totalorder %s9, 3
    %p113 = pnand %p111, %p112
    %p114 = pneg %p113
    // Predicated region
    $region9: #{se_layer.1} parent=5 // pred_check
      _
    $region10: #{se_layer.1} parent=5 // pred_check_branch
      %116 = sbr.rel (%p113) target = $region12
    $region11: #{se_layer.1} parent=5 // pred_region
      %s117 = ssub.s32 %s9, 1
      // Predicated region
      $region13: #{se_layer.1} parent=11 // pred_check
        %p118 = pneg %p56
      $region14: #{se_layer.1} parent=11 // pred_check_branch
        %120 = sbr.rel (%p118) target = $region16
      $region15: #{se_layer.1} parent=11 // pred_region
        _
      $region16: #{se_layer.1} parent=11 // pred_fallthru
        _
      // Predicated region
      $region17: #{se_layer.1} parent=11 // pred_check
        %p121 = pneg %p77
      $region18: #{se_layer.1} parent=11 // pred_check_branch
        %123 = sbr.rel (%p121) target = $region20
      $region19: #{se_layer.1} parent=11 // pred_region
        _
      $region20: #{se_layer.1} parent=11 // pred_fallthru
        _
    $region12: #{se_layer.1} parent=5 // pred_fallthru
      _
    %p124 = scmp.lt.s32.totalorder %s9, 2
    // Predicated region
    $region21: #{se_layer.1} parent=5 // pred_check
      %p125 = pneg %p124
    $region22: #{se_layer.1} parent=5 // pred_check_branch
      %127 = sbr.rel (%p125) target = $region24
    $region23: #{se_layer.1} parent=5 // pred_region
      // Predicated region
      $region25: #{se_layer.1} parent=23 // pred_check
        %p128 = pneg %p29
      $region26: #{se_layer.1} parent=23 // pred_check_branch
        %130 = sbr.rel (%p128) target = $region28
      $region27: #{se_layer.1} parent=23 // pred_region
        %p131 = scmp.lt.s32.totalorder %s9, 1
        %s132 = scalar_select %p131, %s9, 1
        %s133 = smul.addr %s132, 16
        %s134 = smul.addr %s133, 8
        %s135 = scalar_lea.vmem %s0, %s134
      $region28: #{se_layer.1} parent=23 // pred_fallthru
        _
    $region24: #{se_layer.1} parent=5 // pred_fallthru
      _
    %p136 = scmp.le.s32.totalorder 1, %s9
    %p137 = scmp.lt.s32.totalorder %s9, 3
    %p138 = pnand %p136, %p137
    %p139 = pneg %p138
    // Predicated region
    $region29: #{se_layer.1} parent=5 // pred_check
      _
    $region30: #{se_layer.1} parent=5 // pred_check_branch
      %141 = sbr.rel (%p138) target = $region32
    $region31: #{se_layer.1} parent=5 // pred_region
      %s142 = ssub.s32 %s9, 1
      %p143 = scmp.lt.s32.totalorder %s14, 1
      %s144 = scalar_select %p143, %s14, 1
      %s145 = smul.addr %s144, 16
      %s146 = smul.addr %s145, 8
      %s147 = scalar_lea.vmem %s0, %s146
      %p148 = pneg %p35
      %p149 = pneg %p32
      %p150 = pneg %p56
      %p151 = pneg %p53
      %p152 = pneg %p77
      %p153 = pneg %p74
      %p154 = pneg %p103
      %p155 = pneg %p100
      %p156 = scmp.lt.s32.totalorder %s14, 1
      %s157 = scalar_select %p156, %s14, 1
      %s158 = smul.addr %s157, 16
      %s159 = smul.addr %s158, 8
      %s160 = scalar_lea.vmem %s3, %s159
      %p161 = scmp.lt.s32.totalorder %s14, 1
      %s162 = scalar_select %p161, %s14, 1
      %s163 = smul.addr %s162, 16
      %s164 = smul.addr %s163, 8
      %s165 = scalar_lea.vmem %s0, %s164
      %p166 = scmp.lt.s32.totalorder %s14, 1
      %s167 = scalar_select %p166, %s14, 1
      %s168 = smul.addr %s167, 16
      %s169 = smul.addr %s168, 8
      %s170 = scalar_lea.vmem %s3, %s169
      %v171 = vld [vmem:[%s165] sm:$0xff]
      %v172 = vld [vmem:[%s165 + $0x8] sm:$0xff]
      %v173 = vld [vmem:[%s165 + $0x10] sm:$0xff]
      %v174 = vld [vmem:[%s165 + $0x18] sm:$0xff]
      %v175 = vld [vmem:[%s165 + $0x20] sm:$0xff]
      %v176 = vld [vmem:[%s165 + $0x28] sm:$0xff]
      %v177 = vld [vmem:[%s165 + $0x30] sm:$0xff]
      %v178 = vld [vmem:[%s165 + $0x38] sm:$0xff]
      %v179 = vld [vmem:[%s165 + $0x40] sm:$0xff]
      %v180 = vld [vmem:[%s165 + $0x48] sm:$0xff]
      %v181 = vld [vmem:[%s165 + $0x50] sm:$0xff]
      %v182 = vld [vmem:[%s165 + $0x58] sm:$0xff]
      %v183 = vld [vmem:[%s165 + $0x60] sm:$0xff]
      %v184 = vld [vmem:[%s165 + $0x68] sm:$0xff]
      %v185 = vld [vmem:[%s165 + $0x70] sm:$0xff]
      %v186 = vld [vmem:[%s165 + $0x78] sm:$0xff]
      %v187 = vadd.f32 %v171, %v172
      %188 = vadd.xlane.f32.xlu0 %v187
      %v189 = vpop.xlane.xlu0 %188
      %v190 = vadd.f32 %v173, %v174
      %191 = vadd.xlane.f32.xlu0 %v190
      %v192 = vpop.xlane.xlu0 %191
      %v193 = vadd.f32 %v175, %v176
      %194 = vadd.xlane.f32.xlu0 %v193
      %v195 = vpop.xlane.xlu0 %194
      %v196 = vadd.f32 %v177, %v178
      %197 = vadd.xlane.f32.xlu0 %v196
      %v198 = vpop.xlane.xlu0 %197
      %v199 = vadd.f32 %v179, %v180
      %200 = vadd.xlane.f32.xlu0 %v199
      %v201 = vpop.xlane.xlu0 %200
      %v202 = vadd.f32 %v181, %v182
      %203 = vadd.xlane.f32.xlu0 %v202
      %v204 = vpop.xlane.xlu0 %203
      %v205 = vadd.f32 %v183, %v184
      %206 = vadd.xlane.f32.xlu0 %v205
      %v207 = vpop.xlane.xlu0 %206
      %v208 = vadd.f32 %v185, %v186
      %209 = vadd.xlane.f32.xlu0 %v208
      %v210 = vpop.xlane.xlu0 %209
      %v211 = vld [vmem:[%s1] sm:$0xf]
      %v220 = vlaneseq
      %v221 = vand.u32 %v220, 127
      %v222 = vlaneseq
      %v223 = vshrl.u32 %v222, 7
      %v224 = vsub.s32 %v221, %v223
      %v225 = vrot.slane %v189, %v224
      %v226 = vadd.s32 %v221, 4294967288
      %v227 = vlaneseq
      %v228 = vshrl.u32 %v227, 7
      %v229 = vsub.s32 %v226, %v228
      %v230 = vrot.slane %v192, %v229
      %vm231 = vcmask 130112
      %v232 = vsel %vm231, %v230, %v225
      %v233 = vadd.s32 %v221, 4294967280
      %v234 = vlaneseq
      %v235 = vshrl.u32 %v234, 7
      %v236 = vsub.s32 %v233, %v235
      %v237 = vrot.slane %v195, %v236
      %vm238 = vcmask 195712
      %v239 = vsel %vm238, %v237, %v232
      %v240 = vadd.s32 %v221, 4294967272
      %v241 = vlaneseq
      %v242 = vshrl.u32 %v241, 7
      %v243 = vsub.s32 %v240, %v242
      %v244 = vrot.slane %v198, %v243
      %vm245 = vcmask 261312
      %v246 = vsel %vm245, %v244, %v239
      %v247 = vadd.s32 %v221, 4294967264
      %v248 = vlaneseq
      %v249 = vshrl.u32 %v248, 7
      %v250 = vsub.s32 %v247, %v249
      %v251 = vrot.slane %v201, %v250
      %vm252 = vcmask 326912
      %v253 = vsel %vm252, %v251, %v246
      %v254 = vadd.s32 %v221, 4294967256
      %v255 = vlaneseq
      %v256 = vshrl.u32 %v255, 7
      %v257 = vsub.s32 %v254, %v256
      %v258 = vrot.slane %v204, %v257
      %vm259 = vcmask 392512
      %v260 = vsel %vm259, %v258, %v253
      %v261 = vadd.s32 %v221, 4294967248
      %v262 = vlaneseq
      %v263 = vshrl.u32 %v262, 7
      %v264 = vsub.s32 %v261, %v263
      %v265 = vrot.slane %v207, %v264
      %vm266 = vcmask 458112
      %v267 = vsel %vm266, %v265, %v260
      %v268 = vadd.s32 %v221, 4294967240
      %v269 = vlaneseq
      %v270 = vshrl.u32 %v269, 7
      %v271 = vsub.s32 %v268, %v270
      %v272 = vrot.slane %v210, %v271
      %vm273 = vcmask 523712
      %v274 = vsel %vm273, %v272, %v267
      %vm275 = vcmask 523264
      %v276 = vsel %vm275, %v274, 0
      %v279 = vsel %vm275, %v211, 0
      %281 = vmatprep.subr.mxu0 0.0
      %282 = vmatpush1.xpose.msra.mxu0 %v279
      %283 = vmatprep.subr.mxu0 0.0
      %284 = vmatpush1.xpose.msra.mxu0 0.0
      %285 = vmatprep.subr.mxu0 0.0
      %286 = vmatpush1.xpose.msra.mxu0 0.0
      %287 = vmatprep.subr.mxu0 0.0
      %288 = vmatpush1.xpose.msra.mxu0 0.0
      %289 = vmatprep.subr.mxu0 0.0
      %290 = vmatpush1.xpose.msra.mxu0 0.0
      %291 = vmatprep.subr.mxu0 0.0
      %292 = vmatpush1.xpose.msra.mxu0 0.0
      %293 = vmatprep.subr.mxu0 0.0
      %294 = vmatpush1.xpose.msra.mxu0 0.0
      %295 = vmatprep.subr.mxu0 0.0
      %296 = vmatpush1.xpose.msra.mxu0 0.0
      %297 = vmatprep.subr.mxu0 0.0
      %298 = vmatpush1.xpose.msra.mxu0 0.0
      %299 = vmatprep.subr.mxu0 0.0
      %300 = vmatpush1.xpose.msra.mxu0 0.0
      %301 = vmatprep.subr.mxu0 0.0
      %302 = vmatpush1.xpose.msra.mxu0 0.0
      %303 = vmatprep.subr.mxu0 0.0
      %304 = vmatpush1.xpose.msra.mxu0 0.0
      %305 = vmatprep.subr.mxu0 0.0
      %306 = vmatpush1.xpose.msra.mxu0 0.0
      %307 = vmatprep.subr.mxu0 0.0
      %308 = vmatpush1.xpose.msra.mxu0 0.0
      %309 = vmatprep.subr.mxu0 0.0
      %310 = vmatpush1.xpose.msra.mxu0 0.0
      %311 = vmatprep.subr.mxu0 0.0
      %312 = vmatpush1.xpose.msra.mxu0 0.0
      %313 = vmatprep.subr.mxu0 0.0
      %314 = vmatpush1.xpose.msra.mxu0 0.0
      %315 = vmatprep.subr.mxu0 0.0
      %316 = vmatpush1.xpose.msra.mxu0 0.0
      %317 = vmatprep.subr.mxu0 0.0
      %318 = vmatpush1.xpose.msra.mxu0 0.0
      %319 = vmatprep.subr.mxu0 0.0
      %320 = vmatpush1.xpose.msra.mxu0 0.0
      %321 = vmatprep.subr.mxu0 0.0
      %322 = vmatpush1.xpose.msra.mxu0 0.0
      %323 = vmatprep.subr.mxu0 0.0
      %324 = vmatpush1.xpose.msra.mxu0 0.0
      %325 = vmatprep.subr.mxu0 0.0
      %326 = vmatpush1.xpose.msra.mxu0 0.0
      %327 = vmatprep.subr.mxu0 0.0
      %328 = vmatpush1.xpose.msra.mxu0 0.0
      %329 = vmatprep.subr.mxu0 0.0
      %330 = vmatpush1.xpose.msra.mxu0 0.0
      %331 = vmatprep.subr.mxu0 0.0
      %332 = vmatpush1.xpose.msra.mxu0 0.0
      %333 = vmatprep.subr.mxu0 0.0
      %334 = vmatpush1.xpose.msra.mxu0 0.0
      %335 = vmatprep.subr.mxu0 0.0
      %336 = vmatpush1.xpose.msra.mxu0 0.0
      %337 = vmatprep.subr.mxu0 0.0
      %338 = vmatpush1.xpose.msra.mxu0 0.0
      %339 = vmatprep.subr.mxu0 0.0
      %340 = vmatpush1.xpose.msra.mxu0 0.0
      %341 = vmatprep.subr.mxu0 0.0
      %342 = vmatpush1.xpose.msra.mxu0 0.0
      %343 = vmatprep.subr.mxu0 0.0
      %344 = vmatpush1.xpose.msra.mxu0 0.0
      %345 = vmatprep.mubr.f32.mxu0 0.0
      %346 = vmatmul.mubr.f32.gmra.mrb[0].mxu0 %v276
      %v347 = vpop.f32.mrb[0].mxu0
      %v348 = vadd.f32 0.0, %v347
      %v349 = vpop.f32.mrb[0].mxu0
      %350 = vdwg.mxu0
      %v351 = vmax.f32 %v348, 0.0
      %v352 = vld [vmem:[%s2] sm:$0xff]
      %v353 = vld [vmem:[%s2 + $0x8] sm:$0xff]
      %v354 = vld [vmem:[%s2 + $0x10] sm:$0xff]
      %v355 = vld [vmem:[%s2 + $0x18] sm:$0xff]
      %v356 = vld [vmem:[%s2 + $0x20] sm:$0xff]
      %v357 = vld [vmem:[%s2 + $0x28] sm:$0xff]
      %v358 = vld [vmem:[%s2 + $0x30] sm:$0xff]
      %v359 = vld [vmem:[%s2 + $0x38] sm:$0xff]
      %vm360 = vcmask 31744
      %v362 = vsel %vm360, %v351, 0
      %v365 = vsel %vm360, %v352, 0
      %v368 = vsel %vm360, %v353, 0
      %v371 = vsel %vm360, %v354, 0
      %v374 = vsel %vm360, %v355, 0
      %v377 = vsel %vm360, %v356, 0
      %v380 = vsel %vm360, %v357, 0
      %v383 = vsel %vm360, %v358, 0
      %v386 = vsel %vm360, %v359, 0
      %388 = vmatprep.subr.mxu0 0.0
      %389 = vmatpush1.xpose.msra.mxu0 %v365
      %390 = vmatprep.subr.mxu0 0.0
      %391 = vmatpush1.xpose.msra.mxu0 %v368
      %392 = vmatprep.subr.mxu0 0.0
      %393 = vmatpush1.xpose.msra.mxu0 %v371
      %394 = vmatprep.subr.mxu0 0.0
      %395 = vmatpush1.xpose.msra.mxu0 %v374
      %396 = vmatprep.subr.mxu0 0.0
      %397 = vmatpush1.xpose.msra.mxu0 %v377
      %398 = vmatprep.subr.mxu0 0.0
      %399 = vmatpush1.xpose.msra.mxu0 %v380
      %400 = vmatprep.subr.mxu0 0.0
      %401 = vmatpush1.xpose.msra.mxu0 %v383
      %402 = vmatprep.subr.mxu0 0.0
      %403 = vmatpush1.xpose.msra.mxu0 %v386
      %404 = vmatprep.subr.mxu0 0.0
      %405 = vmatpush1.xpose.msra.mxu0 0.0
      %406 = vmatprep.subr.mxu0 0.0
      %407 = vmatpush1.xpose.msra.mxu0 0.0
      %408 = vmatprep.subr.mxu0 0.0
      %409 = vmatpush1.xpose.msra.mxu0 0.0
      %410 = vmatprep.subr.mxu0 0.0
      %411 = vmatpush1.xpose.msra.mxu0 0.0
      %412 = vmatprep.subr.mxu0 0.0
      %413 = vmatpush1.xpose.msra.mxu0 0.0
      %414 = vmatprep.subr.mxu0 0.0
      %415 = vmatpush1.xpose.msra.mxu0 0.0
      %416 = vmatprep.subr.mxu0 0.0
      %417 = vmatpush1.xpose.msra.mxu0 0.0
      %418 = vmatprep.subr.mxu0 0.0
      %419 = vmatpush1.xpose.msra.mxu0 0.0
      %420 = vmatprep.subr.mxu0 0.0
      %421 = vmatpush1.xpose.msra.mxu0 0.0
      %422 = vmatprep.subr.mxu0 0.0
      %423 = vmatpush1.xpose.msra.mxu0 0.0
      %424 = vmatprep.subr.mxu0 0.0
      %425 = vmatpush1.xpose.msra.mxu0 0.0
      %426 = vmatprep.subr.mxu0 0.0
      %427 = vmatpush1.xpose.msra.mxu0 0.0
      %428 = vmatprep.subr.mxu0 0.0
      %429 = vmatpush1.xpose.msra.mxu0 0.0
      %430 = vmatprep.subr.mxu0 0.0
      %431 = vmatpush1.xpose.msra.mxu0 0.0
      %432 = vmatprep.subr.mxu0 0.0
      %433 = vmatpush1.xpose.msra.mxu0 0.0
      %434 = vmatprep.subr.mxu0 0.0
      %435 = vmatpush1.xpose.msra.mxu0 0.0
      %436 = vmatprep.subr.mxu0 0.0
      %437 = vmatpush1.xpose.msra.mxu0 0.0
      %438 = vmatprep.subr.mxu0 0.0
      %439 = vmatpush1.xpose.msra.mxu0 0.0
      %440 = vmatprep.subr.mxu0 0.0
      %441 = vmatpush1.xpose.msra.mxu0 0.0
      %442 = vmatprep.subr.mxu0 0.0
      %443 = vmatpush1.xpose.msra.mxu0 0.0
      %444 = vmatprep.subr.mxu0 0.0
      %445 = vmatpush1.xpose.msra.mxu0 0.0
      %446 = vmatprep.subr.mxu0 0.0
      %447 = vmatpush1.xpose.msra.mxu0 0.0
      %448 = vmatprep.subr.mxu0 0.0
      %449 = vmatpush1.xpose.msra.mxu0 0.0
      %450 = vmatprep.subr.mxu0 0.0
      %451 = vmatpush1.xpose.msra.mxu0 0.0
      %452 = vmatprep.mubr.f32.mxu0 0.0
      %453 = vmatmul.mubr.f32.gmra.mrb[0].mxu0 %v362
      %v454 = vpop.f32.mrb[0].mxu0
      %v455 = vadd.f32 0.0, %v454
      %v456 = vpop.f32.mrb[0].mxu0
      %457 = vdwg.mxu0
      %v458 = vxor.u32 %v455, 2147483648
      %v459 = vmul.f32 %v458, 1.442695
      %v460 = vpow.pop %v459
      %v461 = vadd.f32 %v460, 1.0
      %v462 = vrcp.pop %v461
      %v463 = vmul.f32 1.0, %v462
      %v464 = vlaneseq
      %v465 = vshrl.u32 %v464, 7
      %v466 = vsub.s32 0, %v465
      %v467 = vrot.slane %v463, %v466
      %469 = vbcast.lane.b32.xlu0 %v467, 256
      %v470 = vpop.permute.xlu0 %469
      %s472 = sor.u32 256, 8
      %473 = vbcast.lane.b32.xlu0 %v467, %s472
      %v474 = vpop.permute.xlu0 %473
      %s476 = sor.u32 256, 16
      %477 = vbcast.lane.b32.xlu0 %v467, %s476
      %v478 = vpop.permute.xlu0 %477
      %s480 = sor.u32 256, 24
      %481 = vbcast.lane.b32.xlu0 %v467, %s480
      %v482 = vpop.permute.xlu0 %481
      %s484 = sor.u32 256, 32
      %485 = vbcast.lane.b32.xlu0 %v467, %s484
      %v486 = vpop.permute.xlu0 %485
      %s488 = sor.u32 256, 40
      %489 = vbcast.lane.b32.xlu0 %v467, %s488
      %v490 = vpop.permute.xlu0 %489
      %s492 = sor.u32 256, 48
      %493 = vbcast.lane.b32.xlu0 %v467, %s492
      %v494 = vpop.permute.xlu0 %493
      %s496 = sor.u32 256, 56
      %497 = vbcast.lane.b32.xlu0 %v467, %s496
      %v498 = vpop.permute.xlu0 %497
      %v499 = vmul.f32 %v171, %v470
      %v500 = vmul.f32 %v172, %v470
      %v501 = vmul.f32 %v173, %v474
      %v502 = vmul.f32 %v174, %v474
      %v503 = vmul.f32 %v175, %v478
      %v504 = vmul.f32 %v176, %v478
      %v505 = vmul.f32 %v177, %v482
      %v506 = vmul.f32 %v178, %v482
      %v507 = vmul.f32 %v179, %v486
      %v508 = vmul.f32 %v180, %v486
      %v509 = vmul.f32 %v181, %v490
      %v510 = vmul.f32 %v182, %v490
      %v511 = vmul.f32 %v183, %v494
      %v512 = vmul.f32 %v184, %v494
      %v513 = vmul.f32 %v185, %v498
      %v514 = vmul.f32 %v186, %v498
      %515 = vst [vmem:[%s170] sm:$0xff] %v499
      %516 = vst [vmem:[%s170 + $0x8] sm:$0xff] %v500
      %517 = vst [vmem:[%s170 + $0x10] sm:$0xff] %v501
      %518 = vst [vmem:[%s170 + $0x18] sm:$0xff] %v502
      %519 = vst [vmem:[%s170 + $0x20] sm:$0xff] %v503
      %520 = vst [vmem:[%s170 + $0x28] sm:$0xff] %v504
      %521 = vst [vmem:[%s170 + $0x30] sm:$0xff] %v505
      %522 = vst [vmem:[%s170 + $0x38] sm:$0xff] %v506
      %523 = vst [vmem:[%s170 + $0x40] sm:$0xff] %v507
      %524 = vst [vmem:[%s170 + $0x48] sm:$0xff] %v508
      %525 = vst [vmem:[%s170 + $0x50] sm:$0xff] %v509
      %526 = vst [vmem:[%s170 + $0x58] sm:$0xff] %v510
      %527 = vst [vmem:[%s170 + $0x60] sm:$0xff] %v511
      %528 = vst [vmem:[%s170 + $0x68] sm:$0xff] %v512
      %529 = vst [vmem:[%s170 + $0x70] sm:$0xff] %v513
      %530 = vst [vmem:[%s170 + $0x78] sm:$0xff] %v514
      %p531 = scmp.lt.s32.totalorder %s14, 1
      %s532 = scalar_select %p531, %s14, 1
      %s533 = smul.addr %s532, 16
      %s534 = smul.addr %s533, 8
      %s535 = scalar_lea.vmem %s3, %s534
      // Predicated region
      $region33: #{se_layer.1} parent=31 // pred_check
        %p536 = pneg %p100
      $region34: #{se_layer.1} parent=31 // pred_check_branch
        %538 = sbr.rel (%p536) target = $region36
      $region35: #{se_layer.1} parent=31 // pred_region
        _
      $region36: #{se_layer.1} parent=31 // pred_fallthru
        _
    $region32: #{se_layer.1} parent=5 // pred_fallthru
      _
    %p539 = scmp.le.s32.totalorder 2, %s9
    // Predicated region
    $region37: #{se_layer.1} parent=5 // pred_check
      %p540 = pneg %p539
    $region38: #{se_layer.1} parent=5 // pred_check_branch
      %542 = sbr.rel (%p540) target = $region40
    $region39: #{se_layer.1} parent=5 // pred_region
      %s543 = ssub.s32 %s9, 2
      // Predicated region
      $region41: #{se_layer.1} parent=39 // pred_check
        %p544 = pneg %p106
      $region42: #{se_layer.1} parent=39 // pred_check_branch
        %546 = sbr.rel (%p544) target = $region44
      $region43: #{se_layer.1} parent=39 // pred_region
        %p547 = scmp.lt.s32.totalorder %s15, 1
        %s548 = scalar_select %p547, %s15, 1
        %s549 = smul.addr %s548, 16
        %s550 = smul.addr %s549, 8
        %s551 = scalar_lea.vmem %s3, %s550
      $region44: #{se_layer.1} parent=39 // pred_fallthru
        _
    $region40: #{se_layer.1} parent=5 // pred_fallthru
      _
  $region6: #{se_layer.1} parent=0 // loop_footer
    %s13 = sadd.s32 1, %s9
  $region7: #{se_layer.1} parent=0 // loop_footer_branch
    %8 = sbr.rel target = $region3
  $region8: #{se_layer.1} parent=0 // loop_exit
    _

</llo_original>
